<compile_context>
chip_gen: v7x
topology: tpu7x:2x2x1
jax: 0.10.0
libtpu: 0.0.40
codegen_flags: <defaults>
</compile_context>

<pallas_src>
import math
import functools
import numpy as np
import jax
import jax.numpy as jnp
from jax.experimental import pallas as pl
from jax.experimental.pallas import tpu as pltpu


def cnn_dim_out(in_size, ker, stride, padding):
    return math.floor((in_size - ker + 2 * padding) / stride) + 1


# ---------------------------------------------------------------------------
# Pallas kernel: one fused MXU matmul + bias add for the whole batch.
# ---------------------------------------------------------------------------
def _gconv_fused_kernel(img_ref, w_ref, bias_ref, out_ref):
    # img_ref : (B, ch_in*Npix)            -- K = 128 here
    # w_ref   : (ch_in*Npix, ch_out*4*P_pad)
    # bias_ref: (1, ch_out*4*P_pad)        -- zero in padded lanes
    # out_ref : (B, ch_out*4*P_pad)        -- lane-dense (multiple of 128)
    out_ref[...] = (
        jnp.dot(img_ref[...], w_ref[...], preferred_element_type=jnp.float32)
        + bias_ref[...]
    )


# ---------------------------------------------------------------------------
# Parameter-only preprocessing (run ONCE, outside the hot path).
# ---------------------------------------------------------------------------
def prepare_gconv_params(conv_w, conv_b, mtx1, mtx2, weights, cparams_transform,
                         img_dim):
    ch_out, ch_in, ks, _ = conv_w.shape
    blocks, P, Npix = weights.shape
    hidden = mtx1.shape[1]
    d_out = cnn_dim_out(img_dim, ks, 1, 0)
    assert P == d_out * d_out and Npix == img_dim * img_dim

    LANE = 128
    P_pad = ((P + LANE - 1) // LANE) * LANE

    # cp[i,j,k,a] = (cparams_transform[k] @ conv_w[i,j].flatten())[a]
    cwf = conv_w.reshape(ch_out, ch_in, ks * ks).astype(jnp.float32)
    cp = jnp.einsum('kab,ijb->ijka', cparams_transform.astype(jnp.float32), cwf)

    # m2t[i,j,k,blk] = sum_{a,h} cp[i,j,k,a] * mtx1[a,h] * mtx2[a*H+h, blk]
    mtx2_r = mtx2.astype(jnp.float32).reshape(ks * ks, hidden, blocks)
    m2t = jnp.einsum('ijka,ah,ahl->ijkl', cp, mtx1.astype(jnp.float32), mtx2_r)

    # Fuse M into the pixel-mixing weights (zero-padded P -> P_pad):
    # Weff[j*Npix+q, (i*4+k)*P_pad+p] = sum_blk m2t[i,j,k,blk] * weights[blk,p,q]
    w_pad = jnp.pad(weights.astype(jnp.float32),
                    ((0, 0), (0, P_pad - P), (0, 0)))          # (blocks, P_pad, Npix)
    weff = jnp.einsum('ijkl,lpq->jqikp', m2t, w_pad)           # (ch_in,Npix,ch_out,4,P_pad)
    weff = weff.reshape(ch_in * Npix, ch_out * 4 * P_pad).astype(jnp.float32)

    # Bias: conv_b[i] added once per input channel then summed over j -> * ch_in.
    # Zero in padded lanes so the padded output region stays exactly zero.
    bias_vec = jnp.repeat(conv_b.astype(jnp.float32) * float(ch_in), 4)  # (ch_out*4,)
    lane_mask = (jnp.arange(P_pad) < P).astype(jnp.float32)
    bias_2d = bias_vec[:, None] * lane_mask[None, :]                     # (ch_out*4, P_pad)
    bias_row = bias_2d.reshape(1, ch_out * 4 * P_pad)

    meta = dict(ch_in=ch_in, ch_out=ch_out, d_out=d_out, P=P, P_pad=P_pad, Npix=Npix)
    return weff, bias_row, meta


# ---------------------------------------------------------------------------
# Forward: reshape -> single-step pallas_call -> slice padding.
# ---------------------------------------------------------------------------
def mlp_gconv_z2_pallas(img, weff, bias_row, meta):
    B = img.shape[0]
    ch_in, ch_out = meta['ch_in'], meta['ch_out']
    d_out, P, P_pad, Npix = meta['d_out'], meta['P'], meta['P_pad'], meta['Npix']
    K = ch_in * Npix
    N = ch_out * 4 * P_pad

    img2d = img.reshape(B, K).astype(jnp.float32)

    out_pad = pl.pallas_call(
        _gconv_fused_kernel,
        out_shape=jax.ShapeDtypeStruct((B, N), jnp.float32),
        grid_spec=pltpu.PrefetchScalarGridSpec(
            num_scalar_prefetch=0,
            grid=(1,),
            in_specs=[
                pl.BlockSpec((B, K), lambda i: (0, 0)),
                pl.BlockSpec((K, N), lambda i: (0, 0)),
                pl.BlockSpec((1, N), lambda i: (0, 0)),
            ],
            out_specs=pl.BlockSpec((B, N), lambda i: (0, 0)),
        ),
        compiler_params=pltpu.CompilerParams(
            dimension_semantics=("arbitrary",)),
    )(img2d, weff, bias_row)

    # Drop the lane padding and restore the PyTorch output layout.
    out = out_pad.reshape(B, ch_out * 4, P_pad)[:, :, :P]
    return out.reshape(B, ch_out, 4, d_out, d_out)


# ---------------------------------------------------------------------------
# Pure-JAX reference (literal transcription of the PyTorch forward).
# ---------------------------------------------------------------------------
def mlp_gconv_z2_reference(img, conv_w, conv_b, mtx1, mtx2, weights, cparams_transform):
    B, ch_in, img_dim, _ = img.shape
    ch_out, _, ks, _ = conv_w.shape
    blocks = weights.shape[0]
    d_out = cnn_dim_out(img_dim, ks, 1, 0)

    imgf = img.reshape(B, ch_in, img_dim * img_dim)
    result = jnp.stack([imgf @ weights[i].T for i in range(blocks)])   # (blocks,B,ch_in,P)
    per_result = jnp.transpose(result, (2, 1, 3, 0))                   # (ch_in,B,P,blocks)

    out = []
    for i in range(ch_out):
        out_temp = []
        for j in range(ch_in):
            conv_ij = conv_w[i, j]
            mlp_out = []
            for k in range(4):
                cpv = cparams_transform[k] @ conv_ij.reshape(-1)
                mtx1_temp = (mtx1 * cpv[:, None]).reshape(-1)
                mtx2_temp = mtx1_temp @ mtx2
                result_temp = jnp.sum(mtx2_temp * per_result[j], axis=2) + conv_b[i]
                mlp_out.append(result_temp)
            mlp_out = jnp.transpose(jnp.stack(mlp_out), (1, 0, 2))     # (B,4,P)
            out_temp.append(mlp_out)
        out.append(sum(out_temp))
    out = jnp.stack(out)                                               # (ch_out,B,4,P)
    out = jnp.transpose(out, (1, 0, 2, 3)).reshape(-1, ch_out, 4, d_out, d_out)
    return out


if __name__ == "__main__":
    # Small, deterministic synthetic configuration (replaces torch checkpoint loading).
    B, ch_in, ch_out = 2, 2, 4
    img_dim, ks = 8, 3
    hidden, blocks = 16, 8
    d_out = cnn_dim_out(img_dim, ks, 1, 0)
    P, Npix = d_out * d_out, img_dim * img_dim

    key = jax.random.PRNGKey(0)
    k1, k2, k3, k4, k5, k6, k7 = jax.random.split(key, 7)
    conv_w = jax.random.uniform(k1, (ch_out, ch_in, ks, ks), jnp.float32, -0.5, 0.5)
    conv_b = jax.random.uniform(k2, (ch_out,), jnp.float32, -0.1, 0.1)
    mtx1 = 0.1 * jax.random.normal(k3, (ks * ks, hidden), jnp.float32)
    mtx2 = 0.1 * jax.random.normal(k4, (ks * ks * hidden, blocks), jnp.float32)
    weights = 0.1 * jax.random.normal(k5, (blocks, P, Npix), jnp.float32)
    cparams_transform = 0.1 * jax.random.normal(k6, (4, ks * ks, ks * ks), jnp.float32)
    img = jax.random.normal(k7, (B, ch_in, img_dim, img_dim), jnp.float32)

    # Parameter-only preprocessing: done ONCE, off the hot path.
    weff, bias_row, meta = prepare_gconv_params(
        conv_w, conv_b, mtx1, mtx2, weights, cparams_transform, img_dim)
    weff = jax.block_until_ready(weff)
    bias_row = jax.block_until_ready(bias_row)

    out = mlp_gconv_z2_pallas(img, weff, bias_row, meta)
    out = jax.block_until_ready(out)

    ref = mlp_gconv_z2_reference(img, conv_w, conv_b, mtx1, mtx2, weights, cparams_transform)
    ref = jax.block_until_ready(ref)

    assert out.shape == (B, ch_out, 4, d_out, d_out)
    np.testing.assert_allclose(np.asarray(out), np.asarray(ref), rtol=1e-4, atol=1e-4)
    print("KERNEL_OK")
</pallas_src>

<mosaic_0001>
module attributes {stable_mosaic.version = 11 : i64} {
  func.func @_gconv_fused_kernel(%arg0: i32, %arg1: memref<2x128xf32, #tpu.memory_space<vmem>>, %arg2: memref<128x2048xf32, #tpu.memory_space<vmem>>, %arg3: memref<1x2048xf32, #tpu.memory_space<vmem>>, %arg4: memref<2x2048xf32, #tpu.memory_space<vmem>>) attributes {dimension_semantics = [#tpu.dimension_semantics<arbitrary>], iteration_bounds = array<i64: 1>, scalar_prefetch = 0 : i64, scratch_operands = 0 : i64, tpu.core_type = #tpu.core_type<tc>, window_params = [{pipeline_mode = #tpu.pipeline_mode<synchronous>, transform_indices = @transform_0, window_bounds = array<i64: 2, 128>}, {pipeline_mode = #tpu.pipeline_mode<synchronous>, transform_indices = @transform_1, window_bounds = array<i64: 128, 2048>}, {pipeline_mode = #tpu.pipeline_mode<synchronous>, transform_indices = @transform_2, window_bounds = array<i64: 1, 2048>}, {pipeline_mode = #tpu.pipeline_mode<synchronous>, transform_indices = @transform_3, window_bounds = array<i64: 2, 2048>}]} {
    %c0 = arith.constant 0 : index
    %c0_0 = arith.constant 0 : index
    %0 = vector.load %arg1[%c0, %c0_0] : memref<2x128xf32, #tpu.memory_space<vmem>>, vector<2x128xf32>
    %c0_1 = arith.constant 0 : index
    %c0_2 = arith.constant 0 : index
    %1 = vector.load %arg2[%c0_1, %c0_2] : memref<128x2048xf32, #tpu.memory_space<vmem>>, vector<128x2048xf32>
    %cst = arith.constant dense<0.000000e+00> : vector<2x2048xf32>
    %2 = tpu.matmul %0, %1, %cst {dimension_numbers = #tpu.dot_dimension_numbers<[1], [0], [0], [1], [0, 0, 1, 1], [], []>} : vector<2x128xf32>, vector<128x2048xf32>, vector<2x2048xf32> -> vector<2x2048xf32>
    %c0_3 = arith.constant 0 : index
    %c0_4 = arith.constant 0 : index
    %3 = vector.load %arg3[%c0_3, %c0_4] : memref<1x2048xf32, #tpu.memory_space<vmem>>, vector<1x2048xf32>
    %4 = vector.broadcast %3 : vector<1x2048xf32> to vector<2x2048xf32>
    %5 = arith.addf %2, %4 : vector<2x2048xf32>
    %c0_5 = arith.constant 0 : index
    %c0_6 = arith.constant 0 : index
    %6 = vector.load %arg4[%c0_5, %c0_6] : memref<2x2048xf32, #tpu.memory_space<vmem>>, vector<2x2048xf32>
    tpu.vector_store %arg4[%c0_5, %c0_6], %5 {strides = array<i32>} : memref<2x2048xf32, #tpu.memory_space<vmem>>, vector<2x2048xf32>,
    return
  }
  func.func @transform_0(%arg0: i32) -> (i32, i32) {
    %c0_i32 = arith.constant 0 : i32
    %c0_i32_0 = arith.constant 0 : i32
    %c0_i32_1 = arith.constant 0 : i32
    return %c0_i32, %c0_i32_0 : i32, i32
  }
  func.func @transform_1(%arg0: i32) -> (i32, i32) {
    %c0_i32 = arith.constant 0 : i32
    %c0_i32_0 = arith.constant 0 : i32
    %c0_i32_1 = arith.constant 0 : i32
    return %c0_i32, %c0_i32_0 : i32, i32
  }
  func.func @transform_2(%arg0: i32) -> (i32, i32) {
    %c0_i32 = arith.constant 0 : i32
    %c0_i32_0 = arith.constant 0 : i32
    %c0_i32_1 = arith.constant 0 : i32
    return %c0_i32, %c0_i32_0 : i32, i32
  }
  func.func @transform_3(%arg0: i32) -> (i32, i32) {
    %c0_i32 = arith.constant 0 : i32
    %c0_i32_0 = arith.constant 0 : i32
    %c0_i32_1 = arith.constant 0 : i32
    return %c0_i32, %c0_i32_0 : i32, i32
  }
}

</mosaic_0001>

<llo_original>
// kernel: tpu_custom_call.1
$region0: #{tpu_custom_call.1}
  #allocation0 [shape = 'u32[]', space=smem, size = 0x4, offset = 0x4, fixed_abs, tag = 'smem constant byte address 0x4 - core index']
  #allocation1 [shape = 'u32[144,128]{1,0:T(1,128)}', space=vmem, size = 0x12000, scoped, tag = 'internal scratch']
  %s0 = inlined_call_operand.hbm [shape: f32[2,128], index: 0, kind: input, shape index: {}]
  %s1 = inlined_call_operand.hbm [shape: f32[128,2048], index: 1, kind: input, shape index: {}]
  %s2 = inlined_call_operand.hbm [shape: f32[1,2048], index: 2, kind: input, shape index: {}]
  %s3 = inlined_call_operand.hbm [shape: f32[2,2048], index: 3, kind: output, shape index: {}]
  %s4 = sld [smem:[#allocation0]]
  $region34: #{tpu_custom_call.1} parent=0
    _
  %s6 = ssub.s32 1, %s4
  %s7 = scalar_select 0, %s6, %s4
  $region1: #{tpu_custom_call.1} parent=0
    #allocation2 [shape = 'u8[1024]{0}', space=vmem, size = 0x400, scoped, tag = 'input window, operand 0, single buffered']
    #allocation3 [shape = 's32[1]{0}', space=sflag, size = 0x4, scoped, tag = 'scoped memory for tpu_custom_call.1']
    #allocation4 [shape = 's32[1]{0}', space=sflag, size = 0x4, scoped, tag = 'scoped memory for tpu_custom_call.1']
    #allocation5 [shape = 'u8[1048576]{0}', space=vmem, size = 0x100000, scoped, tag = 'input window, operand 1, single buffered']
    #allocation6 [shape = 's32[1]{0}', space=sflag, size = 0x4, scoped, tag = 'scoped memory for tpu_custom_call.1']
    #allocation7 [shape = 'u8[8192]{0}', space=vmem, size = 0x2000, scoped, tag = 'input window, operand 2, single buffered']
    #allocation8 [shape = 'u8[16384]{0}', space=vmem, size = 0x4000, scoped, tag = 'output window, operand 0, single buffered']
    %8 = vsyncpa [#allocation3], 0
    %9 = vsyncpa [#allocation6], 0
    %10 = vsyncpa [#allocation4], 0
    // Predicated region
    $region2: #{tpu_custom_call.1} parent=1 // pred_check
      _
    $region3: #{tpu_custom_call.1} parent=1 // pred_check_branch
      %12 = sbr.rel (0) target = $region5
    $region4: #{tpu_custom_call.1} parent=1 // pred_region
      %s14 = ssub.s32 32, 32
      %15 = vsyncadd [#allocation3], %s14
      %s17 = sshll.u32 [#allocation2], 4
      %s18 = int_to_ptr.vmem [resolvable:$true] %s17
      %20 = dma.hbm_to_vmem [thread:$0]  %s0, 32, %s18, [#allocation3]
    $region5: #{tpu_custom_call.1} parent=1 // pred_fallthru
      _
    // Predicated region
    $region6: #{tpu_custom_call.1} parent=1 // pred_check
      _
    $region7: #{tpu_custom_call.1} parent=1 // pred_check_branch
      %22 = sbr.rel (0) target = $region9
    $region8: #{tpu_custom_call.1} parent=1 // pred_region
      %s24 = ssub.s32 32768, 32768
      %25 = vsyncadd [#allocation6], %s24
      %s26 = sshll.u32 [#allocation5], 4
      %s27 = int_to_ptr.vmem [resolvable:$true] %s26
      %32 = dma.hbm_to_vmem [thread:$0]  %s1, 32768, %s27, [#allocation6], 2048, 2048, 128
    $region9: #{tpu_custom_call.1} parent=1 // pred_fallthru
      _
    // Predicated region
    $region10: #{tpu_custom_call.1} parent=1 // pred_check
      _
    $region11: #{tpu_custom_call.1} parent=1 // pred_check_branch
      %34 = sbr.rel (0) target = $region13
    $region12: #{tpu_custom_call.1} parent=1 // pred_region
      %s36 = ssub.s32 256, 256
      %37 = vsyncadd [#allocation6], %s36
      %s39 = sshll.u32 [#allocation7], 4
      %s40 = int_to_ptr.vmem [resolvable:$true] %s39
      %42 = dma.hbm_to_vmem [thread:$0]  %s2, 256, %s40, [#allocation6]
    $region13: #{tpu_custom_call.1} parent=1 // pred_fallthru
      _
    // Predicated region
    $region14: #{tpu_custom_call.1} parent=1 // pred_check
      _
    $region15: #{tpu_custom_call.1} parent=1 // pred_check_branch
      %44 = sbr.rel (0) target = $region17
    $region16: #{tpu_custom_call.1} parent=1 // pred_region
      %45 = dma.done [#allocation3], 32
    $region17: #{tpu_custom_call.1} parent=1 // pred_fallthru
      _
    // Predicated region
    $region18: #{tpu_custom_call.1} parent=1 // pred_check
      _
    $region19: #{tpu_custom_call.1} parent=1 // pred_check_branch
      %47 = sbr.rel (0) target = $region21
    $region20: #{tpu_custom_call.1} parent=1 // pred_region
      %48 = dma.done [#allocation6], 32768
    $region21: #{tpu_custom_call.1} parent=1 // pred_fallthru
      _
    // Predicated region
    $region22: #{tpu_custom_call.1} parent=1 // pred_check
      _
    $region23: #{tpu_custom_call.1} parent=1 // pred_check_branch
      %50 = sbr.rel (0) target = $region25
    $region24: #{tpu_custom_call.1} parent=1 // pred_region
      %51 = dma.done [#allocation6], 256
    $region25: #{tpu_custom_call.1} parent=1 // pred_fallthru
      _
    %v52 = vld [vmem:[#allocation2] sm:$0x3]
    %v53 = vld [vmem:[#allocation5] sm:$0xff]
    %v54 = vld [vmem:[#allocation5 + $0x8] sm:$0xff]
    %v55 = vld [vmem:[#allocation5 + $0x10] sm:$0xff]
    %v56 = vld [vmem:[#allocation5 + $0x18] sm:$0xff]
    %v57 = vld [vmem:[#allocation5 + $0x20] sm:$0xff]
    %v58 = vld [vmem:[#allocation5 + $0x28] sm:$0xff]
    %v59 = vld [vmem:[#allocation5 + $0x30] sm:$0xff]
    %v60 = vld [vmem:[#allocation5 + $0x38] sm:$0xff]
    %v61 = vld [vmem:[#allocation5 + $0x40] sm:$0xff]
    %v62 = vld [vmem:[#allocation5 + $0x48] sm:$0xff]
    %v63 = vld [vmem:[#allocation5 + $0x50] sm:$0xff]
    %v64 = vld [vmem:[#allocation5 + $0x58] sm:$0xff]
    %v65 = vld [vmem:[#allocation5 + $0x60] sm:$0xff]
    %v66 = vld [vmem:[#allocation5 + $0x68] sm:$0xff]
    %v67 = vld [vmem:[#allocation5 + $0x70] sm:$0xff]
    %v68 = vld [vmem:[#allocation5 + $0x78] sm:$0xff]
    %v69 = vld [vmem:[#allocation5 + $0x80] sm:$0xff]
    %v70 = vld [vmem:[#allocation5 + $0x88] sm:$0xff]
    %v71 = vld [vmem:[#allocation5 + $0x90] sm:$0xff]
    %v72 = vld [vmem:[#allocation5 + $0x98] sm:$0xff]
    %v73 = vld [vmem:[#allocation5 + $0xa0] sm:$0xff]
    %v74 = vld [vmem:[#allocation5 + $0xa8] sm:$0xff]
    %v75 = vld [vmem:[#allocation5 + $0xb0] sm:$0xff]
    %v76 = vld [vmem:[#allocation5 + $0xb8] sm:$0xff]
    %v77 = vld [vmem:[#allocation5 + $0xc0] sm:$0xff]
    %v78 = vld [vmem:[#allocation5 + $0xc8] sm:$0xff]
    %v79 = vld [vmem:[#allocation5 + $0xd0] sm:$0xff]
    %v80 = vld [vmem:[#allocation5 + $0xd8] sm:$0xff]
    %v81 = vld [vmem:[#allocation5 + $0xe0] sm:$0xff]
    %v82 = vld [vmem:[#allocation5 + $0xe8] sm:$0xff]
    %v83 = vld [vmem:[#allocation5 + $0xf0] sm:$0xff]
    %v84 = vld [vmem:[#allocation5 + $0xf8] sm:$0xff]
    %v85 = vld [vmem:[#allocation5 + $0x100] sm:$0xff]
    %v86 = vld [vmem:[#allocation5 + $0x108] sm:$0xff]
    %v87 = vld [vmem:[#allocation5 + $0x110] sm:$0xff]
    %v88 = vld [vmem:[#allocation5 + $0x118] sm:$0xff]
    %v89 = vld [vmem:[#allocation5 + $0x120] sm:$0xff]
    %v90 = vld [vmem:[#allocation5 + $0x128] sm:$0xff]
    %v91 = vld [vmem:[#allocation5 + $0x130] sm:$0xff]
    %v92 = vld [vmem:[#allocation5 + $0x138] sm:$0xff]
    %v93 = vld [vmem:[#allocation5 + $0x140] sm:$0xff]
    %v94 = vld [vmem:[#allocation5 + $0x148] sm:$0xff]
    %v95 = vld [vmem:[#allocation5 + $0x150] sm:$0xff]
    %v96 = vld [vmem:[#allocation5 + $0x158] sm:$0xff]
    %v97 = vld [vmem:[#allocation5 + $0x160] sm:$0xff]
    %v98 = vld [vmem:[#allocation5 + $0x168] sm:$0xff]
    %v99 = vld [vmem:[#allocation5 + $0x170] sm:$0xff]
    %v100 = vld [vmem:[#allocation5 + $0x178] sm:$0xff]
    %v101 = vld [vmem:[#allocation5 + $0x180] sm:$0xff]
    %v102 = vld [vmem:[#allocation5 + $0x188] sm:$0xff]
    %v103 = vld [vmem:[#allocation5 + $0x190] sm:$0xff]
    %v104 = vld [vmem:[#allocation5 + $0x198] sm:$0xff]
    %v105 = vld [vmem:[#allocation5 + $0x1a0] sm:$0xff]
    %v106 = vld [vmem:[#allocation5 + $0x1a8] sm:$0xff]
    %v107 = vld [vmem:[#allocation5 + $0x1b0] sm:$0xff]
    %v108 = vld [vmem:[#allocation5 + $0x1b8] sm:$0xff]
    %v109 = vld [vmem:[#allocation5 + $0x1c0] sm:$0xff]
    %v110 = vld [vmem:[#allocation5 + $0x1c8] sm:$0xff]
    %v111 = vld [vmem:[#allocation5 + $0x1d0] sm:$0xff]
    %v112 = vld [vmem:[#allocation5 + $0x1d8] sm:$0xff]
    %v113 = vld [vmem:[#allocation5 + $0x1e0] sm:$0xff]
    %v114 = vld [vmem:[#allocation5 + $0x1e8] sm:$0xff]
    %v115 = vld [vmem:[#allocation5 + $0x1f0] sm:$0xff]
    %v116 = vld [vmem:[#allocation5 + $0x1f8] sm:$0xff]
    %v117 = vld [vmem:[#allocation5 + $0x200] sm:$0xff]
    %v118 = vld [vmem:[#allocation5 + $0x208] sm:$0xff]
    %v119 = vld [vmem:[#allocation5 + $0x210] sm:$0xff]
    %v120 = vld [vmem:[#allocation5 + $0x218] sm:$0xff]
    %v121 = vld [vmem:[#allocation5 + $0x220] sm:$0xff]
    %v122 = vld [vmem:[#allocation5 + $0x228] sm:$0xff]
    %v123 = vld [vmem:[#allocation5 + $0x230] sm:$0xff]
    %v124 = vld [vmem:[#allocation5 + $0x238] sm:$0xff]
    %v125 = vld [vmem:[#allocation5 + $0x240] sm:$0xff]
    %v126 = vld [vmem:[#allocation5 + $0x248] sm:$0xff]
    %v127 = vld [vmem:[#allocation5 + $0x250] sm:$0xff]
    %v128 = vld [vmem:[#allocation5 + $0x258] sm:$0xff]
    %v129 = vld [vmem:[#allocation5 + $0x260] sm:$0xff]
    %v130 = vld [vmem:[#allocation5 + $0x268] sm:$0xff]
    %v131 = vld [vmem:[#allocation5 + $0x270] sm:$0xff]
    %v132 = vld [vmem:[#allocation5 + $0x278] sm:$0xff]
    %v133 = vld [vmem:[#allocation5 + $0x280] sm:$0xff]
    %v134 = vld [vmem:[#allocation5 + $0x288] sm:$0xff]
    %v135 = vld [vmem:[#allocation5 + $0x290] sm:$0xff]
    %v136 = vld [vmem:[#allocation5 + $0x298] sm:$0xff]
    %v137 = vld [vmem:[#allocation5 + $0x2a0] sm:$0xff]
    %v138 = vld [vmem:[#allocation5 + $0x2a8] sm:$0xff]
    %v139 = vld [vmem:[#allocation5 + $0x2b0] sm:$0xff]
    %v140 = vld [vmem:[#allocation5 + $0x2b8] sm:$0xff]
    %v141 = vld [vmem:[#allocation5 + $0x2c0] sm:$0xff]
    %v142 = vld [vmem:[#allocation5 + $0x2c8] sm:$0xff]
    %v143 = vld [vmem:[#allocation5 + $0x2d0] sm:$0xff]
    %v144 = vld [vmem:[#allocation5 + $0x2d8] sm:$0xff]
    %v145 = vld [vmem:[#allocation5 + $0x2e0] sm:$0xff]
    %v146 = vld [vmem:[#allocation5 + $0x2e8] sm:$0xff]
    %v147 = vld [vmem:[#allocation5 + $0x2f0] sm:$0xff]
    %v148 = vld [vmem:[#allocation5 + $0x2f8] sm:$0xff]
    %v149 = vld [vmem:[#allocation5 + $0x300] sm:$0xff]
    %v150 = vld [vmem:[#allocation5 + $0x308] sm:$0xff]
    %v151 = vld [vmem:[#allocation5 + $0x310] sm:$0xff]
    %v152 = vld [vmem:[#allocation5 + $0x318] sm:$0xff]
    %v153 = vld [vmem:[#allocation5 + $0x320] sm:$0xff]
    %v154 = vld [vmem:[#allocation5 + $0x328] sm:$0xff]
    %v155 = vld [vmem:[#allocation5 + $0x330] sm:$0xff]
    %v156 = vld [vmem:[#allocation5 + $0x338] sm:$0xff]
    %v157 = vld [vmem:[#allocation5 + $0x340] sm:$0xff]
    %v158 = vld [vmem:[#allocation5 + $0x348] sm:$0xff]
    %v159 = vld [vmem:[#allocation5 + $0x350] sm:$0xff]
    %v160 = vld [vmem:[#allocation5 + $0x358] sm:$0xff]
    %v161 = vld [vmem:[#allocation5 + $0x360] sm:$0xff]
    %v162 = vld [vmem:[#allocation5 + $0x368] sm:$0xff]
    %v163 = vld [vmem:[#allocation5 + $0x370] sm:$0xff]
    %v164 = vld [vmem:[#allocation5 + $0x378] sm:$0xff]
    %v165 = vld [vmem:[#allocation5 + $0x380] sm:$0xff]
    %v166 = vld [vmem:[#allocation5 + $0x388] sm:$0xff]
    %v167 = vld [vmem:[#allocation5 + $0x390] sm:$0xff]
    %v168 = vld [vmem:[#allocation5 + $0x398] sm:$0xff]
    %v169 = vld [vmem:[#allocation5 + $0x3a0] sm:$0xff]
    %v170 = vld [vmem:[#allocation5 + $0x3a8] sm:$0xff]
    %v171 = vld [vmem:[#allocation5 + $0x3b0] sm:$0xff]
    %v172 = vld [vmem:[#allocation5 + $0x3b8] sm:$0xff]
    %v173 = vld [vmem:[#allocation5 + $0x3c0] sm:$0xff]
    %v174 = vld [vmem:[#allocation5 + $0x3c8] sm:$0xff]
    %v175 = vld [vmem:[#allocation5 + $0x3d0] sm:$0xff]
    %v176 = vld [vmem:[#allocation5 + $0x3d8] sm:$0xff]
    %v177 = vld [vmem:[#allocation5 + $0x3e0] sm:$0xff]
    %v178 = vld [vmem:[#allocation5 + $0x3e8] sm:$0xff]
    %v179 = vld [vmem:[#allocation5 + $0x3f0] sm:$0xff]
    %v180 = vld [vmem:[#allocation5 + $0x3f8] sm:$0xff]
    %v181 = vld [vmem:[#allocation5 + $0x400] sm:$0xff]
    %v182 = vld [vmem:[#allocation5 + $0x408] sm:$0xff]
    %v183 = vld [vmem:[#allocation5 + $0x410] sm:$0xff]
    %v184 = vld [vmem:[#allocation5 + $0x418] sm:$0xff]
    %v185 = vld [vmem:[#allocation5 + $0x420] sm:$0xff]
    %v186 = vld [vmem:[#allocation5 + $0x428] sm:$0xff]
    %v187 = vld [vmem:[#allocation5 + $0x430] sm:$0xff]
    %v188 = vld [vmem:[#allocation5 + $0x438] sm:$0xff]
    %v189 = vld [vmem:[#allocation5 + $0x440] sm:$0xff]
    %v190 = vld [vmem:[#allocation5 + $0x448] sm:$0xff]
    %v191 = vld [vmem:[#allocation5 + $0x450] sm:$0xff]
    %v192 = vld [vmem:[#allocation5 + $0x458] sm:$0xff]
    %v193 = vld [vmem:[#allocation5 + $0x460] sm:$0xff]
    %v194 = vld [vmem:[#allocation5 + $0x468] sm:$0xff]
    %v195 = vld [vmem:[#allocation5 + $0x470] sm:$0xff]
    %v196 = vld [vmem:[#allocation5 + $0x478] sm:$0xff]
    %v197 = vld [vmem:[#allocation5 + $0x480] sm:$0xff]
    %v198 = vld [vmem:[#allocation5 + $0x488] sm:$0xff]
    %v199 = vld [vmem:[#allocation5 + $0x490] sm:$0xff]
    %v200 = vld [vmem:[#allocation5 + $0x498] sm:$0xff]
    %v201 = vld [vmem:[#allocation5 + $0x4a0] sm:$0xff]
    %v202 = vld [vmem:[#allocation5 + $0x4a8] sm:$0xff]
    %v203 = vld [vmem:[#allocation5 + $0x4b0] sm:$0xff]
    %v204 = vld [vmem:[#allocation5 + $0x4b8] sm:$0xff]
    %v205 = vld [vmem:[#allocation5 + $0x4c0] sm:$0xff]
    %v206 = vld [vmem:[#allocation5 + $0x4c8] sm:$0xff]
    %v207 = vld [vmem:[#allocation5 + $0x4d0] sm:$0xff]
    %v208 = vld [vmem:[#allocation5 + $0x4d8] sm:$0xff]
    %v209 = vld [vmem:[#allocation5 + $0x4e0] sm:$0xff]
    %v210 = vld [vmem:[#allocation5 + $0x4e8] sm:$0xff]
    %v211 = vld [vmem:[#allocation5 + $0x4f0] sm:$0xff]
    %v212 = vld [vmem:[#allocation5 + $0x4f8] sm:$0xff]
    %v213 = vld [vmem:[#allocation5 + $0x500] sm:$0xff]
    %v214 = vld [vmem:[#allocation5 + $0x508] sm:$0xff]
    %v215 = vld [vmem:[#allocation5 + $0x510] sm:$0xff]
    %v216 = vld [vmem:[#allocation5 + $0x518] sm:$0xff]
    %v217 = vld [vmem:[#allocation5 + $0x520] sm:$0xff]
    %v218 = vld [vmem:[#allocation5 + $0x528] sm:$0xff]
    %v219 = vld [vmem:[#allocation5 + $0x530] sm:$0xff]
    %v220 = vld [vmem:[#allocation5 + $0x538] sm:$0xff]
    %v221 = vld [vmem:[#allocation5 + $0x540] sm:$0xff]
    %v222 = vld [vmem:[#allocation5 + $0x548] sm:$0xff]
    %v223 = vld [vmem:[#allocation5 + $0x550] sm:$0xff]
    %v224 = vld [vmem:[#allocation5 + $0x558] sm:$0xff]
    %v225 = vld [vmem:[#allocation5 + $0x560] sm:$0xff]
    %v226 = vld [vmem:[#allocation5 + $0x568] sm:$0xff]
    %v227 = vld [vmem:[#allocation5 + $0x570] sm:$0xff]
    %v228 = vld [vmem:[#allocation5 + $0x578] sm:$0xff]
    %v229 = vld [vmem:[#allocation5 + $0x580] sm:$0xff]
    %v230 = vld [vmem:[#allocation5 + $0x588] sm:$0xff]
    %v231 = vld [vmem:[#allocation5 + $0x590] sm:$0xff]
    %v232 = vld [vmem:[#allocation5 + $0x598] sm:$0xff]
    %v233 = vld [vmem:[#allocation5 + $0x5a0] sm:$0xff]
    %v234 = vld [vmem:[#allocation5 + $0x5a8] sm:$0xff]
    %v235 = vld [vmem:[#allocation5 + $0x5b0] sm:$0xff]
    %v236 = vld [vmem:[#allocation5 + $0x5b8] sm:$0xff]
    %v237 = vld [vmem:[#allocation5 + $0x5c0] sm:$0xff]
    %v238 = vld [vmem:[#allocation5 + $0x5c8] sm:$0xff]
    %v239 = vld [vmem:[#allocation5 + $0x5d0] sm:$0xff]
    %v240 = vld [vmem:[#allocation5 + $0x5d8] sm:$0xff]
    %v241 = vld [vmem:[#allocation5 + $0x5e0] sm:$0xff]
    %v242 = vld [vmem:[#allocation5 + $0x5e8] sm:$0xff]
    %v243 = vld [vmem:[#allocation5 + $0x5f0] sm:$0xff]
    %v244 = vld [vmem:[#allocation5 + $0x5f8] sm:$0xff]
    %v245 = vld [vmem:[#allocation5 + $0x600] sm:$0xff]
    %v246 = vld [vmem:[#allocation5 + $0x608] sm:$0xff]
    %v247 = vld [vmem:[#allocation5 + $0x610] sm:$0xff]
    %v248 = vld [vmem:[#allocation5 + $0x618] sm:$0xff]
    %v249 = vld [vmem:[#allocation5 + $0x620] sm:$0xff]
    %v250 = vld [vmem:[#allocation5 + $0x628] sm:$0xff]
    %v251 = vld [vmem:[#allocation5 + $0x630] sm:$0xff]
    %v252 = vld [vmem:[#allocation5 + $0x638] sm:$0xff]
    %v253 = vld [vmem:[#allocation5 + $0x640] sm:$0xff]
    %v254 = vld [vmem:[#allocation5 + $0x648] sm:$0xff]
    %v255 = vld [vmem:[#allocation5 + $0x650] sm:$0xff]
    %v256 = vld [vmem:[#allocation5 + $0x658] sm:$0xff]
    %v257 = vld [vmem:[#allocation5 + $0x660] sm:$0xff]
    %v258 = vld [vmem:[#allocation5 + $0x668] sm:$0xff]
    %v259 = vld [vmem:[#allocation5 + $0x670] sm:$0xff]
    %v260 = vld [vmem:[#allocation5 + $0x678] sm:$0xff]
    %v261 = vld [vmem:[#allocation5 + $0x680] sm:$0xff]
    %v262 = vld [vmem:[#allocation5 + $0x688] sm:$0xff]
    %v263 = vld [vmem:[#allocation5 + $0x690] sm:$0xff]
    %v264 = vld [vmem:[#allocation5 + $0x698] sm:$0xff]
    %v265 = vld [vmem:[#allocation5 + $0x6a0] sm:$0xff]
    %v266 = vld [vmem:[#allocation5 + $0x6a8] sm:$0xff]
    %v267 = vld [vmem:[#allocation5 + $0x6b0] sm:$0xff]
    %v268 = vld [vmem:[#allocation5 + $0x6b8] sm:$0xff]
    %v269 = vld [vmem:[#allocation5 + $0x6c0] sm:$0xff]
    %v270 = vld [vmem:[#allocation5 + $0x6c8] sm:$0xff]
    %v271 = vld [vmem:[#allocation5 + $0x6d0] sm:$0xff]
    %v272 = vld [vmem:[#allocation5 + $0x6d8] sm:$0xff]
    %v273 = vld [vmem:[#allocation5 + $0x6e0] sm:$0xff]
    %v274 = vld [vmem:[#allocation5 + $0x6e8] sm:$0xff]
    %v275 = vld [vmem:[#allocation5 + $0x6f0] sm:$0xff]
    %v276 = vld [vmem:[#allocation5 + $0x6f8] sm:$0xff]
    %v277 = vld [vmem:[#allocation5 + $0x700] sm:$0xff]
    %v278 = vld [vmem:[#allocation5 + $0x708] sm:$0xff]
    %v279 = vld [vmem:[#allocation5 + $0x710] sm:$0xff]
    %v280 = vld [vmem:[#allocation5 + $0x718] sm:$0xff]
    %v281 = vld [vmem:[#allocation5 + $0x720] sm:$0xff]
    %v282 = vld [vmem:[#allocation5 + $0x728] sm:$0xff]
    %v283 = vld [vmem:[#allocation5 + $0x730] sm:$0xff]
    %v284 = vld [vmem:[#allocation5 + $0x738] sm:$0xff]
    %v285 = vld [vmem:[#allocation5 + $0x740] sm:$0xff]
    %v286 = vld [vmem:[#allocation5 + $0x748] sm:$0xff]
    %v287 = vld [vmem:[#allocation5 + $0x750] sm:$0xff]
    %v288 = vld [vmem:[#allocation5 + $0x758] sm:$0xff]
    %v289 = vld [vmem:[#allocation5 + $0x760] sm:$0xff]
    %v290 = vld [vmem:[#allocation5 + $0x768] sm:$0xff]
    %v291 = vld [vmem:[#allocation5 + $0x770] sm:$0xff]
    %v292 = vld [vmem:[#allocation5 + $0x778] sm:$0xff]
    %v293 = vld [vmem:[#allocation5 + $0x780] sm:$0xff]
    %v294 = vld [vmem:[#allocation5 + $0x788] sm:$0xff]
    %v295 = vld [vmem:[#allocation5 + $0x790] sm:$0xff]
    %v296 = vld [vmem:[#allocation5 + $0x798] sm:$0xff]
    %v297 = vld [vmem:[#allocation5 + $0x7a0] sm:$0xff]
    %v298 = vld [vmem:[#allocation5 + $0x7a8] sm:$0xff]
    %v299 = vld [vmem:[#allocation5 + $0x7b0] sm:$0xff]
    %v300 = vld [vmem:[#allocation5 + $0x7b8] sm:$0xff]
    %v301 = vld [vmem:[#allocation5 + $0x7c0] sm:$0xff]
    %v302 = vld [vmem:[#allocation5 + $0x7c8] sm:$0xff]
    %v303 = vld [vmem:[#allocation5 + $0x7d0] sm:$0xff]
    %v304 = vld [vmem:[#allocation5 + $0x7d8] sm:$0xff]
    %v305 = vld [vmem:[#allocation5 + $0x7e0] sm:$0xff]
    %v306 = vld [vmem:[#allocation5 + $0x7e8] sm:$0xff]
    %v307 = vld [vmem:[#allocation5 + $0x7f0] sm:$0xff]
    %v308 = vld [vmem:[#allocation5 + $0x7f8] sm:$0xff]
    %v309 = vld [vmem:[#allocation7] sm:$0xff]
    %v310 = vld [vmem:[#allocation7 + $0x8] sm:$0xff]
    %v313 = vlaneseq
    %v314 = vshrl.u32 %v313, 7
    %v315 = vsub.s32 0, %v314
    %v316 = vrot.slane %v309, %v315
    %v317 = vlaneseq
    %v318 = vshrl.u32 %v317, 7
    %v319 = vsub.s32 1, %v318
    %v320 = vrot.slane %v309, %v319
    %v321 = vlaneseq
    %v322 = vshrl.u32 %v321, 7
    %v323 = vsub.s32 2, %v322
    %v324 = vrot.slane %v309, %v323
    %v325 = vlaneseq
    %v326 = vshrl.u32 %v325, 7
    %v327 = vsub.s32 3, %v326
    %v328 = vrot.slane %v309, %v327
    %v329 = vlaneseq
    %v330 = vshrl.u32 %v329, 7
    %v331 = vsub.s32 4, %v330
    %v332 = vrot.slane %v309, %v331
    %v333 = vlaneseq
    %v334 = vshrl.u32 %v333, 7
    %v335 = vsub.s32 5, %v334
    %v336 = vrot.slane %v309, %v335
    %v337 = vlaneseq
    %v338 = vshrl.u32 %v337, 7
    %v339 = vsub.s32 6, %v338
    %v340 = vrot.slane %v309, %v339
    %v341 = vlaneseq
    %v342 = vshrl.u32 %v341, 7
    %v343 = vsub.s32 7, %v342
    %v344 = vrot.slane %v309, %v343
    %v345 = vlaneseq
    %v346 = vshrl.u32 %v345, 7
    %v347 = vsub.s32 0, %v346
    %v348 = vrot.slane %v310, %v347
    %v349 = vlaneseq
    %v350 = vshrl.u32 %v349, 7
    %v351 = vsub.s32 1, %v350
    %v352 = vrot.slane %v310, %v351
    %v353 = vlaneseq
    %v354 = vshrl.u32 %v353, 7
    %v355 = vsub.s32 2, %v354
    %v356 = vrot.slane %v310, %v355
    %v357 = vlaneseq
    %v358 = vshrl.u32 %v357, 7
    %v359 = vsub.s32 3, %v358
    %v360 = vrot.slane %v310, %v359
    %v361 = vlaneseq
    %v362 = vshrl.u32 %v361, 7
    %v363 = vsub.s32 4, %v362
    %v364 = vrot.slane %v310, %v363
    %v365 = vlaneseq
    %v366 = vshrl.u32 %v365, 7
    %v367 = vsub.s32 5, %v366
    %v368 = vrot.slane %v310, %v367
    %v369 = vlaneseq
    %v370 = vshrl.u32 %v369, 7
    %v371 = vsub.s32 6, %v370
    %v372 = vrot.slane %v310, %v371
    %v373 = vlaneseq
    %v374 = vshrl.u32 %v373, 7
    %v375 = vsub.s32 7, %v374
    %v376 = vrot.slane %v310, %v375
    %393 = vmatprep.subr.mxu0 %v54
    %394 = vmatpush1.msra.mxu0 %v53
    %395 = vmatprep.subr.mxu0 %v70
    %396 = vmatpush1.msra.mxu0 %v69
    %397 = vmatprep.subr.mxu0 %v86
    %398 = vmatpush1.msra.mxu0 %v85
    %399 = vmatprep.subr.mxu0 %v102
    %400 = vmatpush1.msra.mxu0 %v101
    %401 = vmatprep.subr.mxu0 %v118
    %402 = vmatpush1.msra.mxu0 %v117
    %403 = vmatprep.subr.mxu0 %v134
    %404 = vmatpush1.msra.mxu0 %v133
    %405 = vmatprep.subr.mxu0 %v150
    %406 = vmatpush1.msra.mxu0 %v149
    %407 = vmatprep.subr.mxu0 %v166
    %408 = vmatpush1.msra.mxu0 %v165
    %409 = vmatprep.subr.mxu0 %v182
    %410 = vmatpush1.msra.mxu0 %v181
    %411 = vmatprep.subr.mxu0 %v198
    %412 = vmatpush1.msra.mxu0 %v197
    %413 = vmatprep.subr.mxu0 %v214
    %414 = vmatpush1.msra.mxu0 %v213
    %415 = vmatprep.subr.mxu0 %v230
    %416 = vmatpush1.msra.mxu0 %v229
    %417 = vmatprep.subr.mxu0 %v246
    %418 = vmatpush1.msra.mxu0 %v245
    %419 = vmatprep.subr.mxu0 %v262
    %420 = vmatpush1.msra.mxu0 %v261
    %421 = vmatprep.subr.mxu0 %v278
    %422 = vmatpush1.msra.mxu0 %v277
    %423 = vmatprep.subr.mxu0 %v294
    %424 = vmatpush1.msra.mxu0 %v293
    %425 = vmatprep.subr.mxu0 0.0
    %426 = vmatpush1.msra.mxu0 0.0
    %427 = vmatprep.subr.mxu0 0.0
    %428 = vmatpush1.msra.mxu0 0.0
    %429 = vmatprep.subr.mxu0 0.0
    %430 = vmatpush1.msra.mxu0 0.0
    %431 = vmatprep.subr.mxu0 0.0
    %432 = vmatpush1.msra.mxu0 0.0
    %433 = vmatprep.subr.mxu0 0.0
    %434 = vmatpush1.msra.mxu0 0.0
    %435 = vmatprep.subr.mxu0 0.0
    %436 = vmatpush1.msra.mxu0 0.0
    %437 = vmatprep.subr.mxu0 0.0
    %438 = vmatpush1.msra.mxu0 0.0
    %439 = vmatprep.subr.mxu0 0.0
    %440 = vmatpush1.msra.mxu0 0.0
    %441 = vmatprep.subr.mxu0 0.0
    %442 = vmatpush1.msra.mxu0 0.0
    %443 = vmatprep.subr.mxu0 0.0
    %444 = vmatpush1.msra.mxu0 0.0
    %445 = vmatprep.subr.mxu0 0.0
    %446 = vmatpush1.msra.mxu0 0.0
    %447 = vmatprep.subr.mxu0 0.0
    %448 = vmatpush1.msra.mxu0 0.0
    %449 = vmatprep.subr.mxu0 0.0
    %450 = vmatpush1.msra.mxu0 0.0
    %451 = vmatprep.subr.mxu0 0.0
    %452 = vmatpush1.msra.mxu0 0.0
    %453 = vmatprep.subr.mxu0 0.0
    %454 = vmatpush1.msra.mxu0 0.0
    %455 = vmatprep.subr.mxu0 0.0
    %456 = vmatpush1.msra.mxu0 0.0
    %457 = vmatprep.mubr.f32.mxu0 0.0
    %458 = vmatmul.mubr.f32.gmra.mrb[0].mxu0 %v52
    %v459 = vpop.f32.mrb[0].mxu0
    %v460 = vadd.f32 %v316, %v459
    %v461 = vpop.f32.mrb[0].mxu0
    %v462 = vadd.f32 %v320, %v461
    %463 = vdwg.mxu0
    %464 = vmatprep.subr.mxu0 %v56
    %465 = vmatpush1.msra.mxu0 %v55
    %466 = vmatprep.subr.mxu0 %v72
    %467 = vmatpush1.msra.mxu0 %v71
    %468 = vmatprep.subr.mxu0 %v88
    %469 = vmatpush1.msra.mxu0 %v87
    %470 = vmatprep.subr.mxu0 %v104
    %471 = vmatpush1.msra.mxu0 %v103
    %472 = vmatprep.subr.mxu0 %v120
    %473 = vmatpush1.msra.mxu0 %v119
    %474 = vmatprep.subr.mxu0 %v136
    %475 = vmatpush1.msra.mxu0 %v135
    %476 = vmatprep.subr.mxu0 %v152
    %477 = vmatpush1.msra.mxu0 %v151
    %478 = vmatprep.subr.mxu0 %v168
    %479 = vmatpush1.msra.mxu0 %v167
    %480 = vmatprep.subr.mxu0 %v184
    %481 = vmatpush1.msra.mxu0 %v183
    %482 = vmatprep.subr.mxu0 %v200
    %483 = vmatpush1.msra.mxu0 %v199
    %484 = vmatprep.subr.mxu0 %v216
    %485 = vmatpush1.msra.mxu0 %v215
    %486 = vmatprep.subr.mxu0 %v232
    %487 = vmatpush1.msra.mxu0 %v231
    %488 = vmatprep.subr.mxu0 %v248
    %489 = vmatpush1.msra.mxu0 %v247
    %490 = vmatprep.subr.mxu0 %v264
    %491 = vmatpush1.msra.mxu0 %v263
    %492 = vmatprep.subr.mxu0 %v280
    %493 = vmatpush1.msra.mxu0 %v279
    %494 = vmatprep.subr.mxu0 %v296
    %495 = vmatpush1.msra.mxu0 %v295
    %496 = vmatprep.subr.mxu0 0.0
    %497 = vmatpush1.msra.mxu0 0.0
    %498 = vmatprep.subr.mxu0 0.0
    %499 = vmatpush1.msra.mxu0 0.0
    %500 = vmatprep.subr.mxu0 0.0
    %501 = vmatpush1.msra.mxu0 0.0
    %502 = vmatprep.subr.mxu0 0.0
    %503 = vmatpush1.msra.mxu0 0.0
    %504 = vmatprep.subr.mxu0 0.0
    %505 = vmatpush1.msra.mxu0 0.0
    %506 = vmatprep.subr.mxu0 0.0
    %507 = vmatpush1.msra.mxu0 0.0
    %508 = vmatprep.subr.mxu0 0.0
    %509 = vmatpush1.msra.mxu0 0.0
    %510 = vmatprep.subr.mxu0 0.0
    %511 = vmatpush1.msra.mxu0 0.0
    %512 = vmatprep.subr.mxu0 0.0
    %513 = vmatpush1.msra.mxu0 0.0
    %514 = vmatprep.subr.mxu0 0.0
    %515 = vmatpush1.msra.mxu0 0.0
    %516 = vmatprep.subr.mxu0 0.0
    %517 = vmatpush1.msra.mxu0 0.0
    %518 = vmatprep.subr.mxu0 0.0
    %519 = vmatpush1.msra.mxu0 0.0
    %520 = vmatprep.subr.mxu0 0.0
    %521 = vmatpush1.msra.mxu0 0.0
    %522 = vmatprep.subr.mxu0 0.0
    %523 = vmatpush1.msra.mxu0 0.0
    %524 = vmatprep.subr.mxu0 0.0
    %525 = vmatpush1.msra.mxu0 0.0
    %526 = vmatprep.subr.mxu0 0.0
    %527 = vmatpush1.msra.mxu0 0.0
    %528 = vmatprep.mubr.f32.mxu0 0.0
    %529 = vmatmul.mubr.f32.gmra.mrb[0].mxu0 %v52
    %v530 = vpop.f32.mrb[0].mxu0
    %v531 = vadd.f32 %v324, %v530
    %v532 = vpop.f32.mrb[0].mxu0
    %v533 = vadd.f32 %v328, %v532
    %534 = vdwg.mxu0
    %535 = vmatprep.subr.mxu0 %v58
    %536 = vmatpush1.msra.mxu0 %v57
    %537 = vmatprep.subr.mxu0 %v74
    %538 = vmatpush1.msra.mxu0 %v73
    %539 = vmatprep.subr.mxu0 %v90
    %540 = vmatpush1.msra.mxu0 %v89
    %541 = vmatprep.subr.mxu0 %v106
    %542 = vmatpush1.msra.mxu0 %v105
    %543 = vmatprep.subr.mxu0 %v122
    %544 = vmatpush1.msra.mxu0 %v121
    %545 = vmatprep.subr.mxu0 %v138
    %546 = vmatpush1.msra.mxu0 %v137
    %547 = vmatprep.subr.mxu0 %v154
    %548 = vmatpush1.msra.mxu0 %v153
    %549 = vmatprep.subr.mxu0 %v170
    %550 = vmatpush1.msra.mxu0 %v169
    %551 = vmatprep.subr.mxu0 %v186
    %552 = vmatpush1.msra.mxu0 %v185
    %553 = vmatprep.subr.mxu0 %v202
    %554 = vmatpush1.msra.mxu0 %v201
    %555 = vmatprep.subr.mxu0 %v218
    %556 = vmatpush1.msra.mxu0 %v217
    %557 = vmatprep.subr.mxu0 %v234
    %558 = vmatpush1.msra.mxu0 %v233
    %559 = vmatprep.subr.mxu0 %v250
    %560 = vmatpush1.msra.mxu0 %v249
    %561 = vmatprep.subr.mxu0 %v266
    %562 = vmatpush1.msra.mxu0 %v265
    %563 = vmatprep.subr.mxu0 %v282
    %564 = vmatpush1.msra.mxu0 %v281
    %565 = vmatprep.subr.mxu0 %v298
    %566 = vmatpush1.msra.mxu0 %v297
    %567 = vmatprep.subr.mxu0 0.0
    %568 = vmatpush1.msra.mxu0 0.0
    %569 = vmatprep.subr.mxu0 0.0
    %570 = vmatpush1.msra.mxu0 0.0
    %571 = vmatprep.subr.mxu0 0.0
    %572 = vmatpush1.msra.mxu0 0.0
    %573 = vmatprep.subr.mxu0 0.0
    %574 = vmatpush1.msra.mxu0 0.0
    %575 = vmatprep.subr.mxu0 0.0
    %576 = vmatpush1.msra.mxu0 0.0
    %577 = vmatprep.subr.mxu0 0.0
    %578 = vmatpush1.msra.mxu0 0.0
    %579 = vmatprep.subr.mxu0 0.0
    %580 = vmatpush1.msra.mxu0 0.0
    %581 = vmatprep.subr.mxu0 0.0
    %582 = vmatpush1.msra.mxu0 0.0
    %583 = vmatprep.subr.mxu0 0.0
    %584 = vmatpush1.msra.mxu0 0.0
    %585 = vmatprep.subr.mxu0 0.0
    %586 = vmatpush1.msra.mxu0 0.0
    %587 = vmatprep.subr.mxu0 0.0
    %588 = vmatpush1.msra.mxu0 0.0
    %589 = vmatprep.subr.mxu0 0.0
    %590 = vmatpush1.msra.mxu0 0.0
    %591 = vmatprep.subr.mxu0 0.0
    %592 = vmatpush1.msra.mxu0 0.0
    %593 = vmatprep.subr.mxu0 0.0
    %594 = vmatpush1.msra.mxu0 0.0
    %595 = vmatprep.subr.mxu0 0.0
    %596 = vmatpush1.msra.mxu0 0.0
    %597 = vmatprep.subr.mxu0 0.0
    %598 = vmatpush1.msra.mxu0 0.0
    %599 = vmatprep.mubr.f32.mxu0 0.0
    %600 = vmatmul.mubr.f32.gmra.mrb[0].mxu0 %v52
    %v601 = vpop.f32.mrb[0].mxu0
    %v602 = vadd.f32 %v332, %v601
    %v603 = vpop.f32.mrb[0].mxu0
    %v604 = vadd.f32 %v336, %v603
    %605 = vdwg.mxu0
    %606 = vmatprep.subr.mxu0 %v60
    %607 = vmatpush1.msra.mxu0 %v59
    %608 = vmatprep.subr.mxu0 %v76
    %609 = vmatpush1.msra.mxu0 %v75
    %610 = vmatprep.subr.mxu0 %v92
    %611 = vmatpush1.msra.mxu0 %v91
    %612 = vmatprep.subr.mxu0 %v108
    %613 = vmatpush1.msra.mxu0 %v107
    %614 = vmatprep.subr.mxu0 %v124
    %615 = vmatpush1.msra.mxu0 %v123
    %616 = vmatprep.subr.mxu0 %v140
    %617 = vmatpush1.msra.mxu0 %v139
    %618 = vmatprep.subr.mxu0 %v156
    %619 = vmatpush1.msra.mxu0 %v155
    %620 = vmatprep.subr.mxu0 %v172
    %621 = vmatpush1.msra.mxu0 %v171
    %622 = vmatprep.subr.mxu0 %v188
    %623 = vmatpush1.msra.mxu0 %v187
    %624 = vmatprep.subr.mxu0 %v204
    %625 = vmatpush1.msra.mxu0 %v203
    %626 = vmatprep.subr.mxu0 %v220
    %627 = vmatpush1.msra.mxu0 %v219
    %628 = vmatprep.subr.mxu0 %v236
    %629 = vmatpush1.msra.mxu0 %v235
    %630 = vmatprep.subr.mxu0 %v252
    %631 = vmatpush1.msra.mxu0 %v251
    %632 = vmatprep.subr.mxu0 %v268
    %633 = vmatpush1.msra.mxu0 %v267
    %634 = vmatprep.subr.mxu0 %v284
    %635 = vmatpush1.msra.mxu0 %v283
    %636 = vmatprep.subr.mxu0 %v300
    %637 = vmatpush1.msra.mxu0 %v299
    %638 = vmatprep.subr.mxu0 0.0
    %639 = vmatpush1.msra.mxu0 0.0
    %640 = vmatprep.subr.mxu0 0.0
    %641 = vmatpush1.msra.mxu0 0.0
    %642 = vmatprep.subr.mxu0 0.0
    %643 = vmatpush1.msra.mxu0 0.0
    %644 = vmatprep.subr.mxu0 0.0
    %645 = vmatpush1.msra.mxu0 0.0
    %646 = vmatprep.subr.mxu0 0.0
    %647 = vmatpush1.msra.mxu0 0.0
    %648 = vmatprep.subr.mxu0 0.0
    %649 = vmatpush1.msra.mxu0 0.0
    %650 = vmatprep.subr.mxu0 0.0
    %651 = vmatpush1.msra.mxu0 0.0
    %652 = vmatprep.subr.mxu0 0.0
    %653 = vmatpush1.msra.mxu0 0.0
    %654 = vmatprep.subr.mxu0 0.0
    %655 = vmatpush1.msra.mxu0 0.0
    %656 = vmatprep.subr.mxu0 0.0
    %657 = vmatpush1.msra.mxu0 0.0
    %658 = vmatprep.subr.mxu0 0.0
    %659 = vmatpush1.msra.mxu0 0.0
    %660 = vmatprep.subr.mxu0 0.0
    %661 = vmatpush1.msra.mxu0 0.0
    %662 = vmatprep.subr.mxu0 0.0
    %663 = vmatpush1.msra.mxu0 0.0
    %664 = vmatprep.subr.mxu0 0.0
    %665 = vmatpush1.msra.mxu0 0.0
    %666 = vmatprep.subr.mxu0 0.0
    %667 = vmatpush1.msra.mxu0 0.0
    %668 = vmatprep.subr.mxu0 0.0
    %669 = vmatpush1.msra.mxu0 0.0
    %670 = vmatprep.mubr.f32.mxu0 0.0
    %671 = vmatmul.mubr.f32.gmra.mrb[0].mxu0 %v52
    %v672 = vpop.f32.mrb[0].mxu0
    %v673 = vadd.f32 %v340, %v672
    %v674 = vpop.f32.mrb[0].mxu0
    %v675 = vadd.f32 %v344, %v674
    %676 = vdwg.mxu0
    %677 = vmatprep.subr.mxu0 %v62
    %678 = vmatpush1.msra.mxu0 %v61
    %679 = vmatprep.subr.mxu0 %v78
    %680 = vmatpush1.msra.mxu0 %v77
    %681 = vmatprep.subr.mxu0 %v94
    %682 = vmatpush1.msra.mxu0 %v93
    %683 = vmatprep.subr.mxu0 %v110
    %684 = vmatpush1.msra.mxu0 %v109
    %685 = vmatprep.subr.mxu0 %v126
    %686 = vmatpush1.msra.mxu0 %v125
    %687 = vmatprep.subr.mxu0 %v142
    %688 = vmatpush1.msra.mxu0 %v141
    %689 = vmatprep.subr.mxu0 %v158
    %690 = vmatpush1.msra.mxu0 %v157
    %691 = vmatprep.subr.mxu0 %v174
    %692 = vmatpush1.msra.mxu0 %v173
    %693 = vmatprep.subr.mxu0 %v190
    %694 = vmatpush1.msra.mxu0 %v189
    %695 = vmatprep.subr.mxu0 %v206
    %696 = vmatpush1.msra.mxu0 %v205
    %697 = vmatprep.subr.mxu0 %v222
    %698 = vmatpush1.msra.mxu0 %v221
    %699 = vmatprep.subr.mxu0 %v238
    %700 = vmatpush1.msra.mxu0 %v237
    %701 = vmatprep.subr.mxu0 %v254
    %702 = vmatpush1.msra.mxu0 %v253
    %703 = vmatprep.subr.mxu0 %v270
    %704 = vmatpush1.msra.mxu0 %v269
    %705 = vmatprep.subr.mxu0 %v286
    %706 = vmatpush1.msra.mxu0 %v285
    %707 = vmatprep.subr.mxu0 %v302
    %708 = vmatpush1.msra.mxu0 %v301
    %709 = vmatprep.subr.mxu0 0.0
    %710 = vmatpush1.msra.mxu0 0.0
    %711 = vmatprep.subr.mxu0 0.0
    %712 = vmatpush1.msra.mxu0 0.0
    %713 = vmatprep.subr.mxu0 0.0
    %714 = vmatpush1.msra.mxu0 0.0
    %715 = vmatprep.subr.mxu0 0.0
    %716 = vmatpush1.msra.mxu0 0.0
    %717 = vmatprep.subr.mxu0 0.0
    %718 = vmatpush1.msra.mxu0 0.0
    %719 = vmatprep.subr.mxu0 0.0
    %720 = vmatpush1.msra.mxu0 0.0
    %721 = vmatprep.subr.mxu0 0.0
    %722 = vmatpush1.msra.mxu0 0.0
    %723 = vmatprep.subr.mxu0 0.0
    %724 = vmatpush1.msra.mxu0 0.0
    %725 = vmatprep.subr.mxu0 0.0
    %726 = vmatpush1.msra.mxu0 0.0
    %727 = vmatprep.subr.mxu0 0.0
    %728 = vmatpush1.msra.mxu0 0.0
    %729 = vmatprep.subr.mxu0 0.0
    %730 = vmatpush1.msra.mxu0 0.0
    %731 = vmatprep.subr.mxu0 0.0
    %732 = vmatpush1.msra.mxu0 0.0
    %733 = vmatprep.subr.mxu0 0.0
    %734 = vmatpush1.msra.mxu0 0.0
    %735 = vmatprep.subr.mxu0 0.0
    %736 = vmatpush1.msra.mxu0 0.0
    %737 = vmatprep.subr.mxu0 0.0
    %738 = vmatpush1.msra.mxu0 0.0
    %739 = vmatprep.subr.mxu0 0.0
    %740 = vmatpush1.msra.mxu0 0.0
    %741 = vmatprep.mubr.f32.mxu0 0.0
    %742 = vmatmul.mubr.f32.gmra.mrb[0].mxu0 %v52
    %v743 = vpop.f32.mrb[0].mxu0
    %v744 = vadd.f32 %v348, %v743
    %v745 = vpop.f32.mrb[0].mxu0
    %v746 = vadd.f32 %v352, %v745
    %747 = vdwg.mxu0
    %748 = vmatprep.subr.mxu0 %v64
    %749 = vmatpush1.msra.mxu0 %v63
    %750 = vmatprep.subr.mxu0 %v80
    %751 = vmatpush1.msra.mxu0 %v79
    %752 = vmatprep.subr.mxu0 %v96
    %753 = vmatpush1.msra.mxu0 %v95
    %754 = vmatprep.subr.mxu0 %v112
    %755 = vmatpush1.msra.mxu0 %v111
    %756 = vmatprep.subr.mxu0 %v128
    %757 = vmatpush1.msra.mxu0 %v127
    %758 = vmatprep.subr.mxu0 %v144
    %759 = vmatpush1.msra.mxu0 %v143
    %760 = vmatprep.subr.mxu0 %v160
    %761 = vmatpush1.msra.mxu0 %v159
    %762 = vmatprep.subr.mxu0 %v176
    %763 = vmatpush1.msra.mxu0 %v175
    %764 = vmatprep.subr.mxu0 %v192
    %765 = vmatpush1.msra.mxu0 %v191
    %766 = vmatprep.subr.mxu0 %v208
    %767 = vmatpush1.msra.mxu0 %v207
    %768 = vmatprep.subr.mxu0 %v224
    %769 = vmatpush1.msra.mxu0 %v223
    %770 = vmatprep.subr.mxu0 %v240
    %771 = vmatpush1.msra.mxu0 %v239
    %772 = vmatprep.subr.mxu0 %v256
    %773 = vmatpush1.msra.mxu0 %v255
    %774 = vmatprep.subr.mxu0 %v272
    %775 = vmatpush1.msra.mxu0 %v271
    %776 = vmatprep.subr.mxu0 %v288
    %777 = vmatpush1.msra.mxu0 %v287
    %778 = vmatprep.subr.mxu0 %v304
    %779 = vmatpush1.msra.mxu0 %v303
    %780 = vmatprep.subr.mxu0 0.0
    %781 = vmatpush1.msra.mxu0 0.0
    %782 = vmatprep.subr.mxu0 0.0
    %783 = vmatpush1.msra.mxu0 0.0
    %784 = vmatprep.subr.mxu0 0.0
    %785 = vmatpush1.msra.mxu0 0.0
    %786 = vmatprep.subr.mxu0 0.0
    %787 = vmatpush1.msra.mxu0 0.0
    %788 = vmatprep.subr.mxu0 0.0
    %789 = vmatpush1.msra.mxu0 0.0
    %790 = vmatprep.subr.mxu0 0.0
    %791 = vmatpush1.msra.mxu0 0.0
    %792 = vmatprep.subr.mxu0 0.0
    %793 = vmatpush1.msra.mxu0 0.0
    %794 = vmatprep.subr.mxu0 0.0
    %795 = vmatpush1.msra.mxu0 0.0
    %796 = vmatprep.subr.mxu0 0.0
    %797 = vmatpush1.msra.mxu0 0.0
    %798 = vmatprep.subr.mxu0 0.0
    %799 = vmatpush1.msra.mxu0 0.0
    %800 = vmatprep.subr.mxu0 0.0
    %801 = vmatpush1.msra.mxu0 0.0
    %802 = vmatprep.subr.mxu0 0.0
    %803 = vmatpush1.msra.mxu0 0.0
    %804 = vmatprep.subr.mxu0 0.0
    %805 = vmatpush1.msra.mxu0 0.0
    %806 = vmatprep.subr.mxu0 0.0
    %807 = vmatpush1.msra.mxu0 0.0
    %808 = vmatprep.subr.mxu0 0.0
    %809 = vmatpush1.msra.mxu0 0.0
    %810 = vmatprep.subr.mxu0 0.0
    %811 = vmatpush1.msra.mxu0 0.0
    %812 = vmatprep.mubr.f32.mxu0 0.0
    %813 = vmatmul.mubr.f32.gmra.mrb[0].mxu0 %v52
    %v814 = vpop.f32.mrb[0].mxu0
    %v815 = vadd.f32 %v356, %v814
    %v816 = vpop.f32.mrb[0].mxu0
    %v817 = vadd.f32 %v360, %v816
    %818 = vdwg.mxu0
    %819 = vmatprep.subr.mxu0 %v66
    %820 = vmatpush1.msra.mxu0 %v65
    %821 = vmatprep.subr.mxu0 %v82
    %822 = vmatpush1.msra.mxu0 %v81
    %823 = vmatprep.subr.mxu0 %v98
    %824 = vmatpush1.msra.mxu0 %v97
    %825 = vmatprep.subr.mxu0 %v114
    %826 = vmatpush1.msra.mxu0 %v113
    %827 = vmatprep.subr.mxu0 %v130
    %828 = vmatpush1.msra.mxu0 %v129
    %829 = vmatprep.subr.mxu0 %v146
    %830 = vmatpush1.msra.mxu0 %v145
    %831 = vmatprep.subr.mxu0 %v162
    %832 = vmatpush1.msra.mxu0 %v161
    %833 = vmatprep.subr.mxu0 %v178
    %834 = vmatpush1.msra.mxu0 %v177
    %835 = vmatprep.subr.mxu0 %v194
    %836 = vmatpush1.msra.mxu0 %v193
    %837 = vmatprep.subr.mxu0 %v210
    %838 = vmatpush1.msra.mxu0 %v209
    %839 = vmatprep.subr.mxu0 %v226
    %840 = vmatpush1.msra.mxu0 %v225
    %841 = vmatprep.subr.mxu0 %v242
    %842 = vmatpush1.msra.mxu0 %v241
    %843 = vmatprep.subr.mxu0 %v258
    %844 = vmatpush1.msra.mxu0 %v257
    %845 = vmatprep.subr.mxu0 %v274
    %846 = vmatpush1.msra.mxu0 %v273
    %847 = vmatprep.subr.mxu0 %v290
    %848 = vmatpush1.msra.mxu0 %v289
    %849 = vmatprep.subr.mxu0 %v306
    %850 = vmatpush1.msra.mxu0 %v305
    %851 = vmatprep.subr.mxu0 0.0
    %852 = vmatpush1.msra.mxu0 0.0
    %853 = vmatprep.subr.mxu0 0.0
    %854 = vmatpush1.msra.mxu0 0.0
    %855 = vmatprep.subr.mxu0 0.0
    %856 = vmatpush1.msra.mxu0 0.0
    %857 = vmatprep.subr.mxu0 0.0
    %858 = vmatpush1.msra.mxu0 0.0
    %859 = vmatprep.subr.mxu0 0.0
    %860 = vmatpush1.msra.mxu0 0.0
    %861 = vmatprep.subr.mxu0 0.0
    %862 = vmatpush1.msra.mxu0 0.0
    %863 = vmatprep.subr.mxu0 0.0
    %864 = vmatpush1.msra.mxu0 0.0
    %865 = vmatprep.subr.mxu0 0.0
    %866 = vmatpush1.msra.mxu0 0.0
    %867 = vmatprep.subr.mxu0 0.0
    %868 = vmatpush1.msra.mxu0 0.0
    %869 = vmatprep.subr.mxu0 0.0
    %870 = vmatpush1.msra.mxu0 0.0
    %871 = vmatprep.subr.mxu0 0.0
    %872 = vmatpush1.msra.mxu0 0.0
    %873 = vmatprep.subr.mxu0 0.0
    %874 = vmatpush1.msra.mxu0 0.0
    %875 = vmatprep.subr.mxu0 0.0
    %876 = vmatpush1.msra.mxu0 0.0
    %877 = vmatprep.subr.mxu0 0.0
    %878 = vmatpush1.msra.mxu0 0.0
    %879 = vmatprep.subr.mxu0 0.0
    %880 = vmatpush1.msra.mxu0 0.0
    %881 = vmatprep.subr.mxu0 0.0
    %882 = vmatpush1.msra.mxu0 0.0
    %883 = vmatprep.mubr.f32.mxu0 0.0
    %884 = vmatmul.mubr.f32.gmra.mrb[0].mxu0 %v52
    %v885 = vpop.f32.mrb[0].mxu0
    %v886 = vadd.f32 %v364, %v885
    %v887 = vpop.f32.mrb[0].mxu0
    %v888 = vadd.f32 %v368, %v887
    %889 = vdwg.mxu0
    %890 = vmatprep.subr.mxu0 %v68
    %891 = vmatpush1.msra.mxu0 %v67
    %892 = vmatprep.subr.mxu0 %v84
    %893 = vmatpush1.msra.mxu0 %v83
    %894 = vmatprep.subr.mxu0 %v100
    %895 = vmatpush1.msra.mxu0 %v99
    %896 = vmatprep.subr.mxu0 %v116
    %897 = vmatpush1.msra.mxu0 %v115
    %898 = vmatprep.subr.mxu0 %v132
    %899 = vmatpush1.msra.mxu0 %v131
    %900 = vmatprep.subr.mxu0 %v148
    %901 = vmatpush1.msra.mxu0 %v147
    %902 = vmatprep.subr.mxu0 %v164
    %903 = vmatpush1.msra.mxu0 %v163
    %904 = vmatprep.subr.mxu0 %v180
    %905 = vmatpush1.msra.mxu0 %v179
    %906 = vmatprep.subr.mxu0 %v196
    %907 = vmatpush1.msra.mxu0 %v195
    %908 = vmatprep.subr.mxu0 %v212
    %909 = vmatpush1.msra.mxu0 %v211
    %910 = vmatprep.subr.mxu0 %v228
    %911 = vmatpush1.msra.mxu0 %v227
    %912 = vmatprep.subr.mxu0 %v244
    %913 = vmatpush1.msra.mxu0 %v243
    %914 = vmatprep.subr.mxu0 %v260
    %915 = vmatpush1.msra.mxu0 %v259
    %916 = vmatprep.subr.mxu0 %v276
    %917 = vmatpush1.msra.mxu0 %v275
    %918 = vmatprep.subr.mxu0 %v292
    %919 = vmatpush1.msra.mxu0 %v291
    %920 = vmatprep.subr.mxu0 %v308
    %921 = vmatpush1.msra.mxu0 %v307
    %922 = vmatprep.subr.mxu0 0.0
    %923 = vmatpush1.msra.mxu0 0.0
    %924 = vmatprep.subr.mxu0 0.0
    %925 = vmatpush1.msra.mxu0 0.0
    %926 = vmatprep.subr.mxu0 0.0
    %927 = vmatpush1.msra.mxu0 0.0
    %928 = vmatprep.subr.mxu0 0.0
    %929 = vmatpush1.msra.mxu0 0.0
    %930 = vmatprep.subr.mxu0 0.0
    %931 = vmatpush1.msra.mxu0 0.0
    %932 = vmatprep.subr.mxu0 0.0
    %933 = vmatpush1.msra.mxu0 0.0
    %934 = vmatprep.subr.mxu0 0.0
    %935 = vmatpush1.msra.mxu0 0.0
    %936 = vmatprep.subr.mxu0 0.0
    %937 = vmatpush1.msra.mxu0 0.0
    %938 = vmatprep.subr.mxu0 0.0
    %939 = vmatpush1.msra.mxu0 0.0
    %940 = vmatprep.subr.mxu0 0.0
    %941 = vmatpush1.msra.mxu0 0.0
    %942 = vmatprep.subr.mxu0 0.0
    %943 = vmatpush1.msra.mxu0 0.0
    %944 = vmatprep.subr.mxu0 0.0
    %945 = vmatpush1.msra.mxu0 0.0
    %946 = vmatprep.subr.mxu0 0.0
    %947 = vmatpush1.msra.mxu0 0.0
    %948 = vmatprep.subr.mxu0 0.0
    %949 = vmatpush1.msra.mxu0 0.0
    %950 = vmatprep.subr.mxu0 0.0
    %951 = vmatpush1.msra.mxu0 0.0
    %952 = vmatprep.subr.mxu0 0.0
    %953 = vmatpush1.msra.mxu0 0.0
    %954 = vmatprep.mubr.f32.mxu0 0.0
    %955 = vmatmul.mubr.f32.gmra.mrb[0].mxu0 %v52
    %v956 = vpop.f32.mrb[0].mxu0
    %v957 = vadd.f32 %v372, %v956
    %v958 = vpop.f32.mrb[0].mxu0
    %v959 = vadd.f32 %v376, %v958
    %960 = vdwg.mxu0
    %v977 = vcombine.low %v460, %v462
    %v978 = vcombine.low %v531, %v533
    %v980 = vunpack.c.l.s4 1983009808
    %v981 = vunpack.c.0.s8 %v980
    %v982 = vlaneseq
    %v983 = vshrl.u32 %v982, 7
    %v984 = vsub.s32 %v981, %v983
    %v985 = vrot.slane %v977, %v984
    %v987 = vunpack.c.l.s4 1983009808
    %v988 = vunpack.c.0.s8 %v987
    %v989 = vlaneseq
    %v990 = vshrl.u32 %v989, 7
    %v991 = vsub.s32 %v988, %v990
    %v992 = vrot.slane %v978, %v991
    %v993 = vcombine.low %v985, %v992
    %v994 = vcombine.low %v602, %v604
    %v995 = vcombine.low %v673, %v675
    %v997 = vunpack.c.l.s4 1983009808
    %v998 = vunpack.c.0.s8 %v997
    %v999 = vlaneseq
    %v1000 = vshrl.u32 %v999, 7
    %v1001 = vsub.s32 %v998, %v1000
    %v1002 = vrot.slane %v994, %v1001
    %v1004 = vunpack.c.l.s4 1983009808
    %v1005 = vunpack.c.0.s8 %v1004
    %v1006 = vlaneseq
    %v1007 = vshrl.u32 %v1006, 7
    %v1008 = vsub.s32 %v1005, %v1007
    %v1009 = vrot.slane %v995, %v1008
    %v1010 = vcombine.low %v1002, %v1009
    %v1011 = vcombine.low %v744, %v746
    %v1012 = vcombine.low %v815, %v817
    %v1014 = vunpack.c.l.s4 1983009808
    %v1015 = vunpack.c.0.s8 %v1014
    %v1016 = vlaneseq
    %v1017 = vshrl.u32 %v1016, 7
    %v1018 = vsub.s32 %v1015, %v1017
    %v1019 = vrot.slane %v1011, %v1018
    %v1021 = vunpack.c.l.s4 1983009808
    %v1022 = vunpack.c.0.s8 %v1021
    %v1023 = vlaneseq
    %v1024 = vshrl.u32 %v1023, 7
    %v1025 = vsub.s32 %v1022, %v1024
    %v1026 = vrot.slane %v1012, %v1025
    %v1027 = vcombine.low %v1019, %v1026
    %v1028 = vcombine.low %v886, %v888
    %v1029 = vcombine.low %v957, %v959
    %v1031 = vunpack.c.l.s4 1983009808
    %v1032 = vunpack.c.0.s8 %v1031
    %v1033 = vlaneseq
    %v1034 = vshrl.u32 %v1033, 7
    %v1035 = vsub.s32 %v1032, %v1034
    %v1036 = vrot.slane %v1028, %v1035
    %v1038 = vunpack.c.l.s4 1983009808
    %v1039 = vunpack.c.0.s8 %v1038
    %v1040 = vlaneseq
    %v1041 = vshrl.u32 %v1040, 7
    %v1042 = vsub.s32 %v1039, %v1041
    %v1043 = vrot.slane %v1029, %v1042
    %v1044 = vcombine.low %v1036, %v1043
    %1049 = vst [vmem:[#allocation8] sm:$0xff] %v993
    %1050 = vst [vmem:[#allocation8 + $0x8] sm:$0xff] %v1010
    %1051 = vst [vmem:[#allocation8 + $0x10] sm:$0xff] %v1027
    %1052 = vst [vmem:[#allocation8 + $0x18] sm:$0xff] %v1044
    // Predicated region
    $region26: #{tpu_custom_call.1} parent=1 // pred_check
      _
    $region27: #{tpu_custom_call.1} parent=1 // pred_check_branch
      %1054 = sbr.rel (0) target = $region29
    $region28: #{tpu_custom_call.1} parent=1 // pred_region
      %s1056 = ssub.s32 512, 512
      %1057 = vsyncadd [#allocation4], %s1056
      %s1059 = sshll.u32 [#allocation8], 4
      %s1060 = int_to_ptr.vmem [resolvable:$true] %s1059
      %1062 = dma.vmem_to_hbm [thread:$0]  %s1060, 512, %s3, [#allocation4]
    $region29: #{tpu_custom_call.1} parent=1 // pred_fallthru
      _
    // Predicated region
    $region30: #{tpu_custom_call.1} parent=1 // pred_check
      _
    $region31: #{tpu_custom_call.1} parent=1 // pred_check_branch
      %1064 = sbr.rel (0) target = $region33
    $region32: #{tpu_custom_call.1} parent=1 // pred_region
      %1065 = dma.done [#allocation4], 512
    $region33: #{tpu_custom_call.1} parent=1 // pred_fallthru
      _
    %1066 = vsyncpa [#allocation3], 1
    %1067 = vsyncpa [#allocation6], 1
    %1068 = vsyncpa [#allocation4], 1

</llo_original>
